<compile_context>
chip_gen: v5e
topology: v5e:2x2
jax: 0.10.0
libtpu: 0.0.40
codegen_flags: <defaults>
</compile_context>

<pallas_src>
import jax
import jax.numpy as jnp
from jax.experimental import pallas as pl
from jax.experimental.pallas import tpu as pltpu

GAMMA = 2       # fixed; implemented as p * p (explicit square), not pow
ALPHA = 0.5
LANES = 128
TM_MAX = 1024   # max rows per grid step
NUM_CORES = 2   # leading "parallel" grid axis (megacore split on v7x)


def bce_focal_loss(_input, target, reduction="elementwise_mean"):
    """Pallas TPU implementation of BCEFocalLoss.forward (gamma=2, alpha=0.5)."""
    assert _input.shape == target.shape
    n = int(_input.size)

    if reduction == "elementwise_mean":
        scale = 1.0 / float(n)
    elif reduction == "sum":
        scale = 1.0
    else:
        # TODO(synk): reduction='none' needs a full-shape output; only mean/sum
        # reductions are implemented (module default is elementwise_mean).
        raise NotImplementedError(reduction)

    x_flat = jnp.ravel(_input)
    t_flat = jnp.ravel(target)

    # Pad only when the element count is not lane-aligned (rare for NCHW maps);
    # the aligned case does zero extra HBM traffic outside the kernel.
    rem = n % LANES
    if rem:
        pad = LANES - rem
        x_flat = jnp.pad(x_flat, (0, pad))
        t_flat = jnp.pad(t_flat, (0, pad))
    rows = int(x_flat.size) // LANES
    x2 = x_flat.reshape(rows, LANES)
    t2 = t_flat.reshape(rows, LANES)

    tm = int(min(TM_MAX, pl.cdiv(rows, 8) * 8))          # row tile, multiple of 8
    row_blocks = int(pl.cdiv(rows, tm))                  # real row-tiles in the slab
    steps_per_core = int(pl.cdiv(row_blocks, NUM_CORES)) # reduction-axis length
    block_elems = tm * LANES
    full_blocks = n // block_elems                       # blocks with no invalid elems
    total_blocks = NUM_CORES * steps_per_core
    any_partial = full_blocks < total_blocks

    def in_index_map(p, i):
        b = p * steps_per_core + i
        # Clamp nominal out-of-range block indices onto the last real block;
        # their contribution is masked to zero inside the kernel.
        return (jnp.minimum(b, row_blocks - 1), 0)

    def kernel(x_ref, t_ref, o_ref):
        p = pl.program_id(0)
        i = pl.program_id(1)
        b = p * steps_per_core + i

        @pl.when(i == 0)
        def _():
            o_ref[...] = jnp.zeros_like(o_ref)

        def accumulate(masked):
            x = x_ref[...].astype(jnp.float32)
            t = t_ref[...].astype(jnp.float32)
            # Shared stable pieces:
            #   pt = sigmoid(x), -log(pt) = softplus(-x), -log(1-pt) = softplus(x)
            ax = jnp.abs(x)
            e = jnp.exp(-ax)                 # exp(-|x|) in (0, 1]
            lp = jnp.log(1.0 + e)            # log1p(exp(-|x|))
            inv = 1.0 / (1.0 + e)
            pt = jnp.where(x >= 0.0, inv, e * inv)
            omp = 1.0 - pt
            neg_log_pt = jnp.maximum(-x, 0.0) + lp      # softplus(-x)
            neg_log_1mpt = jnp.maximum(x, 0.0) + lp     # softplus(x)
            loss = (ALPHA * omp * omp * t * neg_log_pt
                    + (1.0 - ALPHA) * pt * pt * (1.0 - t) * neg_log_1mpt)
            if masked:
                row_ids = jax.lax.broadcasted_iota(jnp.int32, (tm, LANES), 0)
                lane_ids = jax.lax.broadcasted_iota(jnp.int32, (tm, LANES), 1)
                gidx = b * block_elems + row_ids * LANES + lane_ids
                loss = jnp.where(gidx < n, loss, 0.0)
            # VPU adds down the sublane axis into the resident (1,128) accumulator.
            o_ref[...] += jnp.sum(loss, axis=0, keepdims=True)

        if any_partial:
            @pl.when(b < full_blocks)
            def _():
                accumulate(False)

            @pl.when(b >= full_blocks)
            def _():
                accumulate(True)
        else:
            accumulate(False)

    blk = lambda: pl.BlockSpec((tm, LANES), in_index_map)
    partials = pl.pallas_call(
        kernel,
        out_shape=jax.ShapeDtypeStruct((NUM_CORES, 1, LANES), jnp.float32),
        grid_spec=pltpu.PrefetchScalarGridSpec(
            num_scalar_prefetch=0,
            grid=(NUM_CORES, steps_per_core),
            in_specs=[blk(), blk()],
            out_specs=pl.BlockSpec((None, 1, LANES), lambda p, i: (p, 0, 0)),
        ),
        compiler_params=pltpu.CompilerParams(
            dimension_semantics=("parallel", "arbitrary"),
        ),
    )(x2, t2)

    # Tiny (2*128-element) final reduce + reduction scale in the wrapper.
    return jnp.sum(partials) * jnp.float32(scale)


def _ref_bce_focal_loss(x, t, reduction="elementwise_mean"):
    pt = jax.nn.sigmoid(x.astype(jnp.float32))
    t = t.astype(jnp.float32)
    loss = (
        -ALPHA * (1.0 - pt) ** GAMMA * t * jnp.log(pt)
        - (1.0 - ALPHA) * pt ** GAMMA * (1.0 - t) * jnp.log(1.0 - pt)
    )
    if reduction == "elementwise_mean":
        return jnp.mean(loss)
    return jnp.sum(loss)


if __name__ == "__main__":
    key = jax.random.PRNGKey(0)
    k1, k2 = jax.random.split(key)
    # NCHW-style logits and binary targets, small shapes.
    x = jax.random.normal(k1, (2, 4, 16, 16), dtype=jnp.float32)
    target = (jax.random.uniform(k2, (2, 4, 16, 16)) > 0.5).astype(jnp.float32)

    out = bce_focal_loss(x, target)
    out = jax.block_until_ready(out)

    ref = _ref_bce_focal_loss(x, target)
    assert jnp.allclose(out, ref, rtol=5e-5, atol=1e-6), (out, ref)
    print("KERNEL_OK")
</pallas_src>

<mosaic_0001>
module attributes {stable_mosaic.version = 11 : i64} {
  func.func @kernel(%arg0: i32, %arg1: i32, %arg2: memref<16x128xf32, #tpu.memory_space<vmem>>, %arg3: memref<16x128xf32, #tpu.memory_space<vmem>>, %arg4: memref<1x1x128xf32, #tpu.memory_space<vmem>>) attributes {dimension_semantics = [#tpu.dimension_semantics<parallel>, #tpu.dimension_semantics<arbitrary>], iteration_bounds = array<i64: 2, 1>, scalar_prefetch = 0 : i64, scratch_operands = 0 : i64, tpu.core_type = #tpu.core_type<tc>, window_params = [{transform_indices = @transform_0, window_bounds = array<i64: 16, 128>}, {transform_indices = @transform_1, window_bounds = array<i64: 16, 128>}, {transform_indices = @transform_2, window_bounds = array<i64: 1, 1, 128>}]} {
    %c1_i32 = arith.constant 1 : i32
    %0 = arith.muli %arg0, %c1_i32 : i32
    %1 = arith.addi %0, %arg1 : i32
    %c0_i32 = arith.constant 0 : i32
    %2 = arith.cmpi eq, %arg1, %c0_i32 : i32
    %3 = arith.extui %2 : i1 to i32
    %c0_i32_0 = arith.constant 0 : i32
    %4 = arith.cmpi ne, %3, %c0_i32_0 : i32
    scf.if %4 {
      %cst = arith.constant 0.000000e+00 : f32
      %11 = vector.broadcast %cst : f32 to vector<1x128xf32>
      %c0 = arith.constant 0 : index
      %c0_5 = arith.constant 0 : index
      %c0_6 = arith.constant 0 : index
      %12 = vector.load %arg4[%c0, %c0_5, %c0_6] : memref<1x1x128xf32, #tpu.memory_space<vmem>>, vector<1x1x128xf32>
      %13 = vector.shape_cast %12 : vector<1x1x128xf32> to vector<1x128xf32>
      %14 = vector.shape_cast %11 : vector<1x128xf32> to vector<1x1x128xf32>
      tpu.vector_store %arg4[%c0, %c0_5, %c0_6], %14 {strides = array<i32>} : memref<1x1x128xf32, #tpu.memory_space<vmem>>, vector<1x1x128xf32>,
    } else {
    }
    %c1_i32_1 = arith.constant 1 : i32
    %5 = arith.cmpi slt, %1, %c1_i32_1 : i32
    %6 = arith.extui %5 : i1 to i32
    %c0_i32_2 = arith.constant 0 : i32
    %7 = arith.cmpi ne, %6, %c0_i32_2 : i32
    scf.if %7 {
      %c0 = arith.constant 0 : index
      %c0_5 = arith.constant 0 : index
      %11 = vector.load %arg2[%c0, %c0_5] : memref<16x128xf32, #tpu.memory_space<vmem>>, vector<16x128xf32>
      %c0_6 = arith.constant 0 : index
      %c0_7 = arith.constant 0 : index
      %12 = vector.load %arg3[%c0_6, %c0_7] : memref<16x128xf32, #tpu.memory_space<vmem>>, vector<16x128xf32>
      %13 = math.absf %11 : vector<16x128xf32>
      %cst = arith.constant 0.000000e+00 : f32
      %14 = vector.broadcast %cst : f32 to vector<16x128xf32>
      %15 = arith.subf %14, %13 : vector<16x128xf32>
      %16 = math.exp %15 : vector<16x128xf32>
      %cst_8 = arith.constant 1.000000e+00 : f32
      %17 = vector.broadcast %cst_8 : f32 to vector<16x128xf32>
      %18 = arith.addf %17, %16 : vector<16x128xf32>
      %19 = math.log %18 : vector<16x128xf32>
      %cst_9 = arith.constant 1.000000e+00 : f32
      %20 = vector.broadcast %cst_9 : f32 to vector<16x128xf32>
      %21 = arith.addf %20, %16 : vector<16x128xf32>
      %cst_10 = arith.constant 1.000000e+00 : f32
      %22 = vector.broadcast %cst_10 : f32 to vector<16x128xf32>
      %23 = arith.divf %22, %21 : vector<16x128xf32>
      %cst_11 = arith.constant 0.000000e+00 : f32
      %24 = vector.broadcast %cst_11 : f32 to vector<16x128xf32>
      %25 = arith.cmpf oge, %11, %24 : vector<16x128xf32>
      %26 = arith.mulf %16, %23 : vector<16x128xf32>
      %27 = arith.select %25, %23, %26 : vector<16x128xi1>, vector<16x128xf32>
      %cst_12 = arith.constant 1.000000e+00 : f32
      %28 = vector.broadcast %cst_12 : f32 to vector<16x128xf32>
      %29 = arith.subf %28, %27 : vector<16x128xf32>
      %cst_13 = arith.constant 0.000000e+00 : f32
      %30 = vector.broadcast %cst_13 : f32 to vector<16x128xf32>
      %31 = arith.subf %30, %11 : vector<16x128xf32>
      %cst_14 = arith.constant 0.000000e+00 : f32
      %32 = vector.broadcast %cst_14 : f32 to vector<16x128xf32>
      %33 = arith.maximumf %31, %32 : vector<16x128xf32>
      %34 = arith.addf %33, %19 : vector<16x128xf32>
      %cst_15 = arith.constant 0.000000e+00 : f32
      %35 = vector.broadcast %cst_15 : f32 to vector<16x128xf32>
      %36 = arith.maximumf %11, %35 : vector<16x128xf32>
      %37 = arith.addf %36, %19 : vector<16x128xf32>
      %cst_16 = arith.constant 5.000000e-01 : f32
      %38 = vector.broadcast %cst_16 : f32 to vector<16x128xf32>
      %39 = arith.mulf %38, %29 : vector<16x128xf32>
      %40 = arith.mulf %39, %29 : vector<16x128xf32>
      %41 = arith.mulf %40, %12 : vector<16x128xf32>
      %42 = arith.mulf %41, %34 : vector<16x128xf32>
      %cst_17 = arith.constant 5.000000e-01 : f32
      %43 = vector.broadcast %cst_17 : f32 to vector<16x128xf32>
      %44 = arith.mulf %43, %27 : vector<16x128xf32>
      %45 = arith.mulf %44, %27 : vector<16x128xf32>
      %cst_18 = arith.constant 1.000000e+00 : f32
      %46 = vector.broadcast %cst_18 : f32 to vector<16x128xf32>
      %47 = arith.subf %46, %12 : vector<16x128xf32>
      %48 = arith.mulf %45, %47 : vector<16x128xf32>
      %49 = arith.mulf %48, %37 : vector<16x128xf32>
      %50 = arith.addf %42, %49 : vector<16x128xf32>
      %c0_19 = arith.constant 0 : index
      %c0_20 = arith.constant 0 : index
      %c0_21 = arith.constant 0 : index
      %51 = vector.load %arg4[%c0_19, %c0_20, %c0_21] : memref<1x1x128xf32, #tpu.memory_space<vmem>>, vector<1x1x128xf32>
      %52 = vector.shape_cast %51 : vector<1x1x128xf32> to vector<1x128xf32>
      %cst_22 = arith.constant dense<0.000000e+00> : vector<128xf32>
      %53 = vector.multi_reduction <add>, %50, %cst_22 [0] : vector<16x128xf32> to vector<128xf32>
      %54 = vector.shape_cast %53 : vector<128xf32> to vector<1x128xf32>
      %55 = arith.addf %52, %54 : vector<1x128xf32>
      %c0_23 = arith.constant 0 : index
      %c0_24 = arith.constant 0 : index
      %c0_25 = arith.constant 0 : index
      %56 = vector.load %arg4[%c0_23, %c0_24, %c0_25] : memref<1x1x128xf32, #tpu.memory_space<vmem>>, vector<1x1x128xf32>
      %57 = vector.shape_cast %56 : vector<1x1x128xf32> to vector<1x128xf32>
      %58 = vector.shape_cast %55 : vector<1x128xf32> to vector<1x1x128xf32>
      tpu.vector_store %arg4[%c0_23, %c0_24, %c0_25], %58 {strides = array<i32>} : memref<1x1x128xf32, #tpu.memory_space<vmem>>, vector<1x1x128xf32>,
    } else {
    }
    %c1_i32_3 = arith.constant 1 : i32
    %8 = arith.cmpi sge, %1, %c1_i32_3 : i32
    %9 = arith.extui %8 : i1 to i32
    %c0_i32_4 = arith.constant 0 : i32
    %10 = arith.cmpi ne, %9, %c0_i32_4 : i32
    scf.if %10 {
      %c0 = arith.constant 0 : index
      %c0_5 = arith.constant 0 : index
      %11 = vector.load %arg2[%c0, %c0_5] : memref<16x128xf32, #tpu.memory_space<vmem>>, vector<16x128xf32>
      %c0_6 = arith.constant 0 : index
      %c0_7 = arith.constant 0 : index
      %12 = vector.load %arg3[%c0_6, %c0_7] : memref<16x128xf32, #tpu.memory_space<vmem>>, vector<16x128xf32>
      %13 = math.absf %11 : vector<16x128xf32>
      %cst = arith.constant 0.000000e+00 : f32
      %14 = vector.broadcast %cst : f32 to vector<16x128xf32>
      %15 = arith.subf %14, %13 : vector<16x128xf32>
      %16 = math.exp %15 : vector<16x128xf32>
      %cst_8 = arith.constant 1.000000e+00 : f32
      %17 = vector.broadcast %cst_8 : f32 to vector<16x128xf32>
      %18 = arith.addf %17, %16 : vector<16x128xf32>
      %19 = math.log %18 : vector<16x128xf32>
      %cst_9 = arith.constant 1.000000e+00 : f32
      %20 = vector.broadcast %cst_9 : f32 to vector<16x128xf32>
      %21 = arith.addf %20, %16 : vector<16x128xf32>
      %cst_10 = arith.constant 1.000000e+00 : f32
      %22 = vector.broadcast %cst_10 : f32 to vector<16x128xf32>
      %23 = arith.divf %22, %21 : vector<16x128xf32>
      %cst_11 = arith.constant 0.000000e+00 : f32
      %24 = vector.broadcast %cst_11 : f32 to vector<16x128xf32>
      %25 = arith.cmpf oge, %11, %24 : vector<16x128xf32>
      %26 = arith.mulf %16, %23 : vector<16x128xf32>
      %27 = arith.select %25, %23, %26 : vector<16x128xi1>, vector<16x128xf32>
      %cst_12 = arith.constant 1.000000e+00 : f32
      %28 = vector.broadcast %cst_12 : f32 to vector<16x128xf32>
      %29 = arith.subf %28, %27 : vector<16x128xf32>
      %cst_13 = arith.constant 0.000000e+00 : f32
      %30 = vector.broadcast %cst_13 : f32 to vector<16x128xf32>
      %31 = arith.subf %30, %11 : vector<16x128xf32>
      %cst_14 = arith.constant 0.000000e+00 : f32
      %32 = vector.broadcast %cst_14 : f32 to vector<16x128xf32>
      %33 = arith.maximumf %31, %32 : vector<16x128xf32>
      %34 = arith.addf %33, %19 : vector<16x128xf32>
      %cst_15 = arith.constant 0.000000e+00 : f32
      %35 = vector.broadcast %cst_15 : f32 to vector<16x128xf32>
      %36 = arith.maximumf %11, %35 : vector<16x128xf32>
      %37 = arith.addf %36, %19 : vector<16x128xf32>
      %cst_16 = arith.constant 5.000000e-01 : f32
      %38 = vector.broadcast %cst_16 : f32 to vector<16x128xf32>
      %39 = arith.mulf %38, %29 : vector<16x128xf32>
      %40 = arith.mulf %39, %29 : vector<16x128xf32>
      %41 = arith.mulf %40, %12 : vector<16x128xf32>
      %42 = arith.mulf %41, %34 : vector<16x128xf32>
      %cst_17 = arith.constant 5.000000e-01 : f32
      %43 = vector.broadcast %cst_17 : f32 to vector<16x128xf32>
      %44 = arith.mulf %43, %27 : vector<16x128xf32>
      %45 = arith.mulf %44, %27 : vector<16x128xf32>
      %cst_18 = arith.constant 1.000000e+00 : f32
      %46 = vector.broadcast %cst_18 : f32 to vector<16x128xf32>
      %47 = arith.subf %46, %12 : vector<16x128xf32>
      %48 = arith.mulf %45, %47 : vector<16x128xf32>
      %49 = arith.mulf %48, %37 : vector<16x128xf32>
      %50 = arith.addf %42, %49 : vector<16x128xf32>
      %51 = tpu.iota {dimensions = array<i32: 0>} : vector<16x128xi32>
      %52 = tpu.iota {dimensions = array<i32: 1>} : vector<16x128xi32>
      %c2048_i32 = arith.constant 2048 : i32
      %53 = arith.muli %1, %c2048_i32 : i32
      %c128_i32 = arith.constant 128 : i32
      %54 = vector.broadcast %c128_i32 : i32 to vector<16x128xi32>
      %55 = arith.muli %51, %54 : vector<16x128xi32>
      %56 = vector.broadcast %53 : i32 to vector<16x128xi32>
      %57 = arith.addi %56, %55 : vector<16x128xi32>
      %58 = arith.addi %57, %52 : vector<16x128xi32>
      %c2048_i32_19 = arith.constant 2048 : i32
      %59 = vector.broadcast %c2048_i32_19 : i32 to vector<16x128xi32>
      %60 = arith.cmpi slt, %58, %59 : vector<16x128xi32>
      %cst_20 = arith.constant 0.000000e+00 : f32
      %61 = vector.broadcast %cst_20 : f32 to vector<16x128xf32>
      %62 = arith.select %60, %50, %61 : vector<16x128xi1>, vector<16x128xf32>
      %c0_21 = arith.constant 0 : index
      %c0_22 = arith.constant 0 : index
      %c0_23 = arith.constant 0 : index
      %63 = vector.load %arg4[%c0_21, %c0_22, %c0_23] : memref<1x1x128xf32, #tpu.memory_space<vmem>>, vector<1x1x128xf32>
      %64 = vector.shape_cast %63 : vector<1x1x128xf32> to vector<1x128xf32>
      %cst_24 = arith.constant dense<0.000000e+00> : vector<128xf32>
      %65 = vector.multi_reduction <add>, %62, %cst_24 [0] : vector<16x128xf32> to vector<128xf32>
      %66 = vector.shape_cast %65 : vector<128xf32> to vector<1x128xf32>
      %67 = arith.addf %64, %66 : vector<1x128xf32>
      %c0_25 = arith.constant 0 : index
      %c0_26 = arith.constant 0 : index
      %c0_27 = arith.constant 0 : index
      %68 = vector.load %arg4[%c0_25, %c0_26, %c0_27] : memref<1x1x128xf32, #tpu.memory_space<vmem>>, vector<1x1x128xf32>
      %69 = vector.shape_cast %68 : vector<1x1x128xf32> to vector<1x128xf32>
      %70 = vector.shape_cast %67 : vector<1x128xf32> to vector<1x1x128xf32>
      tpu.vector_store %arg4[%c0_25, %c0_26, %c0_27], %70 {strides = array<i32>} : memref<1x1x128xf32, #tpu.memory_space<vmem>>, vector<1x1x128xf32>,
    } else {
    }
    return
  }
  func.func @transform_0(%arg0: i32, %arg1: i32) -> (i32, i32) {
    %c1_i32 = arith.constant 1 : i32
    %0 = arith.muli %arg0, %c1_i32 : i32
    %1 = arith.addi %0, %arg1 : i32
    %c0_i32 = arith.constant 0 : i32
    %2 = arith.minsi %1, %c0_i32 : i32
    %c0_i32_0 = arith.constant 0 : i32
    %c0_i32_1 = arith.constant 0 : i32
    return %2, %c0_i32_0 : i32, i32
  }
  func.func @transform_1(%arg0: i32, %arg1: i32) -> (i32, i32) {
    %c1_i32 = arith.constant 1 : i32
    %0 = arith.muli %arg0, %c1_i32 : i32
    %1 = arith.addi %0, %arg1 : i32
    %c0_i32 = arith.constant 0 : i32
    %2 = arith.minsi %1, %c0_i32 : i32
    %c0_i32_0 = arith.constant 0 : i32
    %c0_i32_1 = arith.constant 0 : i32
    return %2, %c0_i32_0 : i32, i32
  }
  func.func @transform_2(%arg0: i32, %arg1: i32) -> (i32, i32, i32) {
    %c0_i32 = arith.constant 0 : i32
    %c0_i32_0 = arith.constant 0 : i32
    %c0_i32_1 = arith.constant 0 : i32
    return %arg0, %c0_i32, %c0_i32_0 : i32, i32, i32
  }
}

</mosaic_0001>

<llo_original>
// kernel: tpu_custom_call.1
$region0: #{tpu_custom_call.1}
  #allocation0 [shape = 'u32[]', space=smem, size = 0x4, offset = 0x4, fixed_abs, tag = 'smem constant byte address 0x4 - core index']
  #allocation1 [shape = 'u32[72,128]{1,0:T(1,128)}', space=vmem, size = 0x9000, scoped, tag = 'internal scratch']
  %s0 = inlined_call_operand.hbm [shape: f32[16,128], index: 0, kind: input, shape index: {}]
  %s1 = inlined_call_operand.hbm [shape: f32[16,128], index: 1, kind: input, shape index: {}]
  %s2 = inlined_call_operand.hbm [shape: f32[2,1,128], index: 2, kind: output, shape index: {}]
  %s3 = sld [smem:[#allocation0]]
  $region61: #{tpu_custom_call.1} parent=0
    _
  %s5 = ssub.s32 1, %s3
  %s6 = scalar_select 0, %s5, %s3
  $region1: #{tpu_custom_call.1} parent=0
    #allocation2 [shape = 'u8[16384]{0}', space=vmem, size = 0x4000, scoped, tag = 'input window, operand 0']
    #allocation3 [shape = 's32[2]{0}', space=sflag, size = 0x8, scoped, tag = 'scoped memory for tpu_custom_call.1']
    #allocation4 [shape = 's32[2]{0}', space=sflag, size = 0x8, scoped, tag = 'scoped memory for tpu_custom_call.1']
    #allocation5 [shape = 'u8[16384]{0}', space=vmem, size = 0x4000, scoped, tag = 'input window, operand 1']
    #allocation6 [shape = 's32[2]{0}', space=sflag, size = 0x8, scoped, tag = 'scoped memory for tpu_custom_call.1']
    #allocation7 [shape = 'u8[1024]{0}', space=vmem, size = 0x400, scoped, tag = 'output window, operand 0']
    %7 = vsyncpa [#allocation3], 0
    %s8 = scalar_lea.sflag [#allocation3], 1
    %9 = vsyncpa %s8, 0
    %10 = vsyncpa [#allocation6], 0
    %s11 = scalar_lea.sflag [#allocation6], 1
    %12 = vsyncpa %s11, 0
    %13 = vsyncpa [#allocation4], 0
    %s14 = scalar_lea.sflag [#allocation4], 1
    %15 = vsyncpa %s14, 0
    loop: start=0, step=1, limit=4
    $region2: #{tpu_custom_call.1} parent=1 // loop_pre_header
      _
    $region3: #{tpu_custom_call.1} parent=1 // loop_header
      %s17 = sphi 0, %s21
      %p18 = scmp.ge.s32.totalorder %s17, 4
      %s24 = sphi 0, %s36
      %s25 = sphi 0, %s32
      %s26 = sphi 0, %s24
      %s27 = sphi 0, %s25
      %s28 = sphi 0, %s26
      %s29 = sphi 0, %s27
      %s45 = sphi 0, %s47
      %s48 = sphi 0, %s45
      %s49 = sphi 0, %s48
      %s65 = sphi 0, %s49
      %s77 = sphi 0, %s79
      %s80 = sphi 0, %s77
      %s81 = sphi 0, %s80
      %s97 = sphi 0, %s81
      %s103 = sphi 0, %s105
      %s106 = sphi 0, %s103
      %s107 = sphi 0, %s106
      %s123 = sphi 0, %s107
    $region4: #{tpu_custom_call.1} parent=1 // loop_header_branch
      %20 = sbr.rel (%p18) target = $region8
    $region5: #{tpu_custom_call.1} parent=1 // loop_body
      %s22 = ssub.s32 %s17, 1
      %s23 = ssub.s32 %s17, 2
      %s30 = sadd.s32 1, %s25
      %p31 = scmp.ge.s32.totalorder %s30, 1
      %s32 = scalar_select %p31, 0, %s30
      %s33 = sadd.s32 1, %s24
      %s34 = scalar_select %p31, %s33, %s24
      %p35 = scmp.ge.s32.totalorder %s34, 2
      %s36 = scalar_select %p35, 0, %s34
      %s37 = sadd.s32 %s24, %s25
      %p38 = scmp.lt.s32.totalorder %s37, 0
      %s39 = scalar_select %p38, %s37, 0
      %s40 = sadd.s32 %s36, %s32
      %p41 = scmp.lt.s32.totalorder %s40, 0
      %s42 = scalar_select %p41, %s40, 0
      %s43 = ssub.s32 %s39, %s42
      %p44 = scmp.eq.s32.totalorder %s43, 0
      %s46 = sadd.s32 %s45, 1
      %s47 = scalar_select %p44, %s45, %s46
      %p50 = pneg %p44
      %p51 = scmp.eq.s32.totalorder %s17, 1
      %p52 = por %p50, %p51
      %p53 = scmp.ne.s32.totalorder %s45, %s48
      %p54 = scmp.eq.s32.totalorder %s17, 0
      %p55 = por %p53, %p54
      %p56 = scmp.ne.s32.totalorder %s45, %s48
      %p57 = scmp.eq.s32.totalorder %s22, 1
      %p58 = por %p56, %p57
      %p59 = scmp.ne.s32.totalorder %s48, %s49
      %p60 = scmp.eq.s32.totalorder %s22, 0
      %p61 = por %p59, %p60
      %p62 = scmp.ne.s32.totalorder %s48, %s49
      %p63 = scmp.eq.s32.totalorder %s23, 1
      %p64 = por %p62, %p63
      %p66 = scmp.ne.s32.totalorder %s49, %s65
      %p67 = scmp.eq.s32.totalorder %s23, 0
      %p68 = por %p66, %p67
      %s69 = sadd.s32 %s24, %s25
      %p70 = scmp.lt.s32.totalorder %s69, 0
      %s71 = scalar_select %p70, %s69, 0
      %s72 = sadd.s32 %s36, %s32
      %p73 = scmp.lt.s32.totalorder %s72, 0
      %s74 = scalar_select %p73, %s72, 0
      %s75 = ssub.s32 %s71, %s74
      %p76 = scmp.eq.s32.totalorder %s75, 0
      %s78 = sadd.s32 %s77, 1
      %s79 = scalar_select %p76, %s77, %s78
      %p82 = pneg %p76
      %p83 = scmp.eq.s32.totalorder %s17, 1
      %p84 = por %p82, %p83
      %p85 = scmp.ne.s32.totalorder %s77, %s80
      %p86 = scmp.eq.s32.totalorder %s17, 0
      %p87 = por %p85, %p86
      %p88 = scmp.ne.s32.totalorder %s77, %s80
      %p89 = scmp.eq.s32.totalorder %s22, 1
      %p90 = por %p88, %p89
      %p91 = scmp.ne.s32.totalorder %s80, %s81
      %p92 = scmp.eq.s32.totalorder %s22, 0
      %p93 = por %p91, %p92
      %p94 = scmp.ne.s32.totalorder %s80, %s81
      %p95 = scmp.eq.s32.totalorder %s23, 1
      %p96 = por %p94, %p95
      %p98 = scmp.ne.s32.totalorder %s81, %s97
      %p99 = scmp.eq.s32.totalorder %s23, 0
      %p100 = por %p98, %p99
      %s101 = ssub.s32 %s24, %s36
      %p102 = scmp.eq.s32.totalorder %s101, 0
      %s104 = sadd.s32 %s103, 1
      %s105 = scalar_select %p102, %s103, %s104
      %p108 = pneg %p102
      %p109 = scmp.eq.s32.totalorder %s17, 1
      %p110 = por %p108, %p109
      %p111 = scmp.ne.s32.totalorder %s103, %s106
      %p112 = scmp.eq.s32.totalorder %s17, 0
      %p113 = por %p111, %p112
      %p114 = scmp.ne.s32.totalorder %s103, %s106
      %p115 = scmp.eq.s32.totalorder %s22, 1
      %p116 = por %p114, %p115
      %p117 = scmp.ne.s32.totalorder %s106, %s107
      %p118 = scmp.eq.s32.totalorder %s22, 0
      %p119 = por %p117, %p118
      %p120 = scmp.ne.s32.totalorder %s106, %s107
      %p121 = scmp.eq.s32.totalorder %s23, 1
      %p122 = por %p120, %p121
      %p124 = scmp.ne.s32.totalorder %s107, %s123
      %p125 = scmp.eq.s32.totalorder %s23, 0
      %p126 = por %p124, %p125
      %p127 = scmp.le.s32.totalorder 1, %s17
      %p128 = scmp.lt.s32.totalorder %s17, 3
      %p129 = pnand %p127, %p128
      %p130 = pneg %p129
      // Predicated region
      $region9: #{tpu_custom_call.1} parent=5 // pred_check
        _
      $region10: #{tpu_custom_call.1} parent=5 // pred_check_branch
        %132 = sbr.rel (%p129) target = $region12
      $region11: #{tpu_custom_call.1} parent=5 // pred_region
        %s133 = ssub.s32 %s17, 1
      $region12: #{tpu_custom_call.1} parent=5 // pred_fallthru
        _
      %p134 = scmp.lt.s32.totalorder %s17, 2
      // Predicated region
      $region13: #{tpu_custom_call.1} parent=5 // pred_check
        %p135 = pneg %p134
      $region14: #{tpu_custom_call.1} parent=5 // pred_check_branch
        %137 = sbr.rel (%p135) target = $region16
      $region15: #{tpu_custom_call.1} parent=5 // pred_region
        // Predicated region
        $region17: #{tpu_custom_call.1} parent=15 // pred_check
          %p138 = pneg %p55
        $region18: #{tpu_custom_call.1} parent=15 // pred_check_branch
          %140 = sbr.rel (%p138) target = $region20
        $region19: #{tpu_custom_call.1} parent=15 // pred_region
          %s141 = sand.u32 %s45, 1
          %s142 = scalar_lea.sflag [#allocation3], %s141
          %s143 = sand.u32 %s45, 1
          %s144 = smul.addr %s143, 16
          %s145 = scalar_lea.vmem [#allocation2], %s144
          %s146 = sadd.s32 %s24, %s25
          %p147 = scmp.lt.s32.totalorder %s146, 0
          %s148 = scalar_select %p147, %s146, 0
          %s149 = smul.u32 2, %s148
          %151 = vsyncadd %s142, 0
          %s152 = smul.addr %s149, 8
          %s153 = scalar_lea.hbm %s0, %s152
          %s154 = sshll.u32 %s153, 4
          %s155 = int_to_ptr.hbm [resolvable:$true] %s154
          %s156 = sshll.u32 %s145, 4
          %s157 = int_to_ptr.vmem [resolvable:$true] %s156
          %162 = dma.hbm_to_vmem [thread:$0]  %s155, 256, %s157, %s142, 128, 128, 8
        $region20: #{tpu_custom_call.1} parent=15 // pred_fallthru
          _
        // Predicated region
        $region21: #{tpu_custom_call.1} parent=15 // pred_check
          %p163 = pneg %p87
        $region22: #{tpu_custom_call.1} parent=15 // pred_check_branch
          %165 = sbr.rel (%p163) target = $region24
        $region23: #{tpu_custom_call.1} parent=15 // pred_region
          %s166 = sand.u32 %s77, 1
          %s167 = scalar_lea.sflag [#allocation6], %s166
          %s168 = sand.u32 %s77, 1
          %s169 = smul.addr %s168, 16
          %s170 = scalar_lea.vmem [#allocation5], %s169
          %s171 = sadd.s32 %s24, %s25
          %p172 = scmp.lt.s32.totalorder %s171, 0
          %s173 = scalar_select %p172, %s171, 0
          %s174 = smul.u32 2, %s173
          %176 = vsyncadd %s167, 0
          %s177 = smul.addr %s174, 8
          %s178 = scalar_lea.hbm %s1, %s177
          %s179 = sshll.u32 %s178, 4
          %s180 = int_to_ptr.hbm [resolvable:$true] %s179
          %s181 = sshll.u32 %s170, 4
          %s182 = int_to_ptr.vmem [resolvable:$true] %s181
          %187 = dma.hbm_to_vmem [thread:$0]  %s180, 256, %s182, %s167, 128, 128, 8
        $region24: #{tpu_custom_call.1} parent=15 // pred_fallthru
          _
      $region16: #{tpu_custom_call.1} parent=5 // pred_fallthru
        _
      %p188 = scmp.le.s32.totalorder 1, %s17
      %p189 = scmp.lt.s32.totalorder %s17, 3
      %p190 = pnand %p188, %p189
      %p191 = pneg %p190
      // Predicated region
      $region25: #{tpu_custom_call.1} parent=5 // pred_check
        _
      $region26: #{tpu_custom_call.1} parent=5 // pred_check_branch
        %193 = sbr.rel (%p190) target = $region28
      $region27: #{tpu_custom_call.1} parent=5 // pred_region
        %s194 = ssub.s32 %s17, 1
        %s195 = sand.u32 %s48, 1
        %s196 = scalar_lea.sflag [#allocation3], %s195
        %s197 = sand.u32 %s48, 1
        %s198 = smul.addr %s197, 16
        %s199 = scalar_lea.vmem [#allocation2], %s198
        // Predicated region
        $region29: #{tpu_custom_call.1} parent=27 // pred_check
          %p200 = pneg %p61
        $region30: #{tpu_custom_call.1} parent=27 // pred_check_branch
          %202 = sbr.rel (%p200) target = $region32
        $region31: #{tpu_custom_call.1} parent=27 // pred_region
          %204 = dma.done %s196, 256
        $region32: #{tpu_custom_call.1} parent=27 // pred_fallthru
          _
        %s205 = sand.u32 %s80, 1
        %s206 = scalar_lea.sflag [#allocation6], %s205
        %s207 = sand.u32 %s80, 1
        %s208 = smul.addr %s207, 16
        %s209 = scalar_lea.vmem [#allocation5], %s208
        // Predicated region
        $region33: #{tpu_custom_call.1} parent=27 // pred_check
          %p210 = pneg %p93
        $region34: #{tpu_custom_call.1} parent=27 // pred_check_branch
          %212 = sbr.rel (%p210) target = $region36
        $region35: #{tpu_custom_call.1} parent=27 // pred_region
          %214 = dma.done %s206, 256
        $region36: #{tpu_custom_call.1} parent=27 // pred_fallthru
          _
        %s215 = sand.u32 %s48, 1
        %s216 = scalar_lea.sflag [#allocation3], %s215
        %s217 = sand.u32 %s48, 1
        %s218 = smul.addr %s217, 16
        %s219 = scalar_lea.vmem [#allocation2], %s218
        %p220 = pneg %p61
        %p221 = pneg %p58
        %s222 = sand.u32 %s80, 1
        %s223 = scalar_lea.sflag [#allocation6], %s222
        %s224 = sand.u32 %s80, 1
        %s225 = smul.addr %s224, 16
        %s226 = scalar_lea.vmem [#allocation5], %s225
        %p227 = pneg %p93
        %p228 = pneg %p90
        %p229 = pneg %p119
        %p230 = pneg %p116
        %s231 = sand.u32 %s106, 1
        %s232 = scalar_lea.sflag [#allocation4], %s231
        %s233 = sand.u32 %s106, 1
        %s234 = scalar_lea.vmem [#allocation7], %s233
        %s235 = sadd.s32 %s26, %s27
        %p236 = scmp.lt.s32.totalorder %s235, 0
        %s237 = scalar_select %p236, %s235, 0
        %s238 = smul.u32 2, %s237
        %s239 = sadd.s32 %s26, %s27
        %p240 = scmp.lt.s32.totalorder %s239, 0
        %s241 = scalar_select %p240, %s239, 0
        %s242 = smul.u32 2, %s241
        %s243 = sadd.s32 %s26, %s27
        %p244 = scmp.eq.s32.totalorder %s27, 0
        // Predicated region
        $region37: #{tpu_custom_call.1} parent=27 // pred_check
          %p245 = pneg %p244
        $region38: #{tpu_custom_call.1} parent=27 // pred_check_branch
          %247 = sbr.rel (%p245) target = $region40
        $region39: #{tpu_custom_call.1} parent=27 // pred_region
          %248 = vst [vmem:[%s234] sm:$0x1] 0.0
        $region40: #{tpu_custom_call.1} parent=27 // pred_fallthru
          _
        %p249 = scmp.lt.s32.totalorder %s243, 1
        // Predicated region
        $region41: #{tpu_custom_call.1} parent=27 // pred_check
          %p250 = pneg %p249
        $region42: #{tpu_custom_call.1} parent=27 // pred_check_branch
          %252 = sbr.rel (%p250) target = $region44
        $region43: #{tpu_custom_call.1} parent=27 // pred_region
          %v253 = vld [vmem:[%s199] sm:$0xff]
          %v254 = vld [vmem:[%s199 + $0x8] sm:$0xff]
          %v255 = vld [vmem:[%s209] sm:$0xff]
          %v256 = vld [vmem:[%s209 + $0x8] sm:$0xff]
          %v257 = vand.u32 2147483647, %v253
          %v258 = vand.u32 2147483647, %v254
          %v259 = vsub.f32 0.0, %v257
          %v260 = vsub.f32 0.0, %v258
          %v261 = vmul.f32 %v259, 1.442695
          %v262 = vpow.pop %v261
          %v263 = vmul.f32 %v260, 1.442695
          %v264 = vpow.pop %v263
          %v265 = vadd.f32 %v262, 1.0
          %v266 = vadd.f32 %v264, 1.0
          %v267 = vlog2.pop %v265
          %v268 = vmul.f32 %v267, 0.6931472
          %v269 = vlog2.pop %v266
          %v270 = vmul.f32 %v269, 0.6931472
          %v271 = vrcp.pop %v265
          %v272 = vmul.f32 %v265, %v271
          %v273 = vsub.f32 1.0, %v272
          %v274 = vmul.f32 %v271, %v273
          %v275 = vadd.f32 %v271, %v274
          %vm276 = vweird.f32 %v265
          %vm277 = vweird.f32 %v271
          %vm278 = vmor %vm276, %vm277
          %v279 = vsel %vm278, %v271, %v275
          %v280 = vand.u32 2147483647, %v265
          %vm281 = vcmp.eq.f32.partialorder %v280, 8.507059e+37
          %v282 = vand.u32 %v265, 2147483648
          %v283 = vor.u32 1.1754944e-38, %v282
          %v284 = vsel %vm281, %v283, %v279
          %v285 = vmul.f32 1.0, %v284
          %v286 = vrcp.pop %v266
          %v287 = vmul.f32 %v266, %v286
          %v288 = vsub.f32 1.0, %v287
          %v289 = vmul.f32 %v286, %v288
          %v290 = vadd.f32 %v286, %v289
          %vm291 = vweird.f32 %v266
          %vm292 = vweird.f32 %v286
          %vm293 = vmor %vm291, %vm292
          %v294 = vsel %vm293, %v286, %v290
          %v295 = vand.u32 2147483647, %v266
          %vm296 = vcmp.eq.f32.partialorder %v295, 8.507059e+37
          %v297 = vand.u32 %v266, 2147483648
          %v298 = vor.u32 1.1754944e-38, %v297
          %v299 = vsel %vm296, %v298, %v294
          %v300 = vmul.f32 1.0, %v299
          %vm301 = vcmp.ge.f32.partialorder %v253, 0.0
          %vm302 = vcmp.ge.f32.partialorder %v254, 0.0
          %v303 = vmul.f32 %v262, %v285
          %v304 = vmul.f32 %v264, %v300
          %v305 = vsel %vm301, %v285, %v303
          %v306 = vsel %vm302, %v300, %v304
          %v307 = vsub.f32 1.0, %v305
          %v308 = vsub.f32 1.0, %v306
          %v309 = vsub.f32 0.0, %v253
          %v310 = vsub.f32 0.0, %v254
          %v311 = vmax.f32 %v309, 0.0
          %v312 = vmax.f32 %v310, 0.0
          %v313 = vadd.f32 %v311, %v268
          %v314 = vadd.f32 %v312, %v270
          %v315 = vmax.f32 %v253, 0.0
          %v316 = vmax.f32 %v254, 0.0
          %v317 = vadd.f32 %v315, %v268
          %v318 = vadd.f32 %v316, %v270
          %v319 = vmul.f32 %v307, 0.5
          %v320 = vmul.f32 %v308, 0.5
          %v321 = vmul.f32 %v319, %v307
          %v322 = vmul.f32 %v320, %v308
          %v323 = vmul.f32 %v321, %v255
          %v324 = vmul.f32 %v322, %v256
          %v325 = vmul.f32 %v323, %v313
          %v326 = vmul.f32 %v324, %v314
          %v327 = vmul.f32 %v305, 0.5
          %v328 = vmul.f32 %v306, 0.5
          %v329 = vmul.f32 %v327, %v305
          %v330 = vmul.f32 %v328, %v306
          %v331 = vsub.f32 1.0, %v255
          %v332 = vsub.f32 1.0, %v256
          %v333 = vmul.f32 %v329, %v331
          %v334 = vmul.f32 %v330, %v332
          %v335 = vmul.f32 %v333, %v317
          %v336 = vmul.f32 %v334, %v318
          %v337 = vadd.f32 %v325, %v335
          %v338 = vadd.f32 %v326, %v336
          %v339 = vld [vmem:[%s234] sm:$0x1]
          %v340 = vadd.f32 %v337, %v338
          %v341 = vrot.slane %v340, 4
          %v342 = vadd.f32 %v340, %v341
          %v343 = vrot.slane %v342, 2
          %v344 = vadd.f32 %v342, %v343
          %v345 = vrot.slane %v344, 1
          %v346 = vadd.f32 %v344, %v345
          %v347 = vadd.f32 %v339, %v346
          %348 = vst [vmem:[%s234] sm:$0x1] %v347
        $region44: #{tpu_custom_call.1} parent=27 // pred_fallthru
          _
        %p349 = scmp.ge.s32.totalorder %s243, 1
        // Predicated region
        $region45: #{tpu_custom_call.1} parent=27 // pred_check
          %p350 = pneg %p349
        $region46: #{tpu_custom_call.1} parent=27 // pred_check_branch
          %352 = sbr.rel (%p350) target = $region48
        $region47: #{tpu_custom_call.1} parent=27 // pred_region
          %v353 = vld [vmem:[%s199] sm:$0xff]
          %v354 = vld [vmem:[%s199 + $0x8] sm:$0xff]
          %v355 = vld [vmem:[%s209] sm:$0xff]
          %v356 = vld [vmem:[%s209 + $0x8] sm:$0xff]
          %v357 = vand.u32 2147483647, %v353
          %v358 = vand.u32 2147483647, %v354
          %v359 = vsub.f32 0.0, %v357
          %v360 = vsub.f32 0.0, %v358
          %v361 = vmul.f32 %v359, 1.442695
          %v362 = vpow.pop %v361
          %v363 = vmul.f32 %v360, 1.442695
          %v364 = vpow.pop %v363
          %v365 = vadd.f32 %v362, 1.0
          %v366 = vadd.f32 %v364, 1.0
          %v367 = vlog2.pop %v365
          %v368 = vmul.f32 %v367, 0.6931472
          %v369 = vlog2.pop %v366
          %v370 = vmul.f32 %v369, 0.6931472
          %v371 = vrcp.pop %v365
          %v372 = vmul.f32 %v365, %v371
          %v373 = vsub.f32 1.0, %v372
          %v374 = vmul.f32 %v371, %v373
          %v375 = vadd.f32 %v371, %v374
          %vm376 = vweird.f32 %v365
          %vm377 = vweird.f32 %v371
          %vm378 = vmor %vm376, %vm377
          %v379 = vsel %vm378, %v371, %v375
          %v380 = vand.u32 2147483647, %v365
          %vm381 = vcmp.eq.f32.partialorder %v380, 8.507059e+37
          %v382 = vand.u32 %v365, 2147483648
          %v383 = vor.u32 1.1754944e-38, %v382
          %v384 = vsel %vm381, %v383, %v379
          %v385 = vmul.f32 1.0, %v384
          %v386 = vrcp.pop %v366
          %v387 = vmul.f32 %v366, %v386
          %v388 = vsub.f32 1.0, %v387
          %v389 = vmul.f32 %v386, %v388
          %v390 = vadd.f32 %v386, %v389
          %vm391 = vweird.f32 %v366
          %vm392 = vweird.f32 %v386
          %vm393 = vmor %vm391, %vm392
          %v394 = vsel %vm393, %v386, %v390
          %v395 = vand.u32 2147483647, %v366
          %vm396 = vcmp.eq.f32.partialorder %v395, 8.507059e+37
          %v397 = vand.u32 %v366, 2147483648
          %v398 = vor.u32 1.1754944e-38, %v397
          %v399 = vsel %vm396, %v398, %v394
          %v400 = vmul.f32 1.0, %v399
          %vm401 = vcmp.ge.f32.partialorder %v353, 0.0
          %vm402 = vcmp.ge.f32.partialorder %v354, 0.0
          %v403 = vmul.f32 %v362, %v385
          %v404 = vmul.f32 %v364, %v400
          %v405 = vsel %vm401, %v385, %v403
          %v406 = vsel %vm402, %v400, %v404
          %v407 = vsub.f32 1.0, %v405
          %v408 = vsub.f32 1.0, %v406
          %v409 = vsub.f32 0.0, %v353
          %v410 = vsub.f32 0.0, %v354
          %v411 = vmax.f32 %v409, 0.0
          %v412 = vmax.f32 %v410, 0.0
          %v413 = vadd.f32 %v411, %v368
          %v414 = vadd.f32 %v412, %v370
          %v415 = vmax.f32 %v353, 0.0
          %v416 = vmax.f32 %v354, 0.0
          %v417 = vadd.f32 %v415, %v368
          %v418 = vadd.f32 %v416, %v370
          %v419 = vmul.f32 %v407, 0.5
          %v420 = vmul.f32 %v408, 0.5
          %v421 = vmul.f32 %v419, %v407
          %v422 = vmul.f32 %v420, %v408
          %v423 = vmul.f32 %v421, %v355
          %v424 = vmul.f32 %v422, %v356
          %v425 = vmul.f32 %v423, %v413
          %v426 = vmul.f32 %v424, %v414
          %v427 = vmul.f32 %v405, 0.5
          %v428 = vmul.f32 %v406, 0.5
          %v429 = vmul.f32 %v427, %v405
          %v430 = vmul.f32 %v428, %v406
          %v431 = vsub.f32 1.0, %v355
          %v432 = vsub.f32 1.0, %v356
          %v433 = vmul.f32 %v429, %v431
          %v434 = vmul.f32 %v430, %v432
          %v435 = vmul.f32 %v433, %v417
          %v436 = vmul.f32 %v434, %v418
          %v437 = vadd.f32 %v425, %v435
          %v438 = vadd.f32 %v426, %v436
          %v439 = vlaneseq
          %v440 = vshrl.u32 %v439, 7
          %v441 = vadd.s32 %v440, 8
          %v442 = vlaneseq
          %v443 = vand.u32 %v442, 127
          %s444 = smul.u32 %s243, 2048
          %v445 = vmul.u32 %v440, 128
          %v446 = vmul.u32 %v441, 128
          %v447 = vstv %s444
          %v448 = vadd.s32 %v447, %v445
          %v449 = vadd.s32 %v447, %v446
          %v450 = vadd.s32 %v448, %v443
          %v451 = vadd.s32 %v449, %v443
          %vm452 = vcmp.lt.s32.totalorder %v450, 2048
          %vm453 = vcmp.lt.s32.totalorder %v451, 2048
          %v454 = vsel %vm452, %v437, 0.0
          %v455 = vsel %vm453, %v438, 0.0
          %v456 = vld [vmem:[%s234] sm:$0x1]
          %v457 = vadd.f32 %v454, %v455
          %v458 = vrot.slane %v457, 4
          %v459 = vadd.f32 %v457, %v458
          %v460 = vrot.slane %v459, 2
          %v461 = vadd.f32 %v459, %v460
          %v462 = vrot.slane %v461, 1
          %v463 = vadd.f32 %v461, %v462
          %v464 = vadd.f32 %v456, %v463
          %465 = vst [vmem:[%s234] sm:$0x1] %v464
        $region48: #{tpu_custom_call.1} parent=27 // pred_fallthru
          _
        %s466 = sand.u32 %s106, 1
        %s467 = scalar_lea.sflag [#allocation4], %s466
        %s468 = sand.u32 %s106, 1
        %s469 = scalar_lea.vmem [#allocation7], %s468
        // Predicated region
        $region49: #{tpu_custom_call.1} parent=27 // pred_check
          %p470 = pneg %p116
        $region50: #{tpu_custom_call.1} parent=27 // pred_check_branch
          %472 = sbr.rel (%p470) target = $region52
        $region51: #{tpu_custom_call.1} parent=27 // pred_region
          %474 = vsyncadd %s467, 0
          %s475 = scalar_lea.hbm %s2, %s26
          %s477 = sshll.u32 %s469, 4
          %s478 = int_to_ptr.vmem [resolvable:$true] %s477
          %s479 = sshll.u32 %s475, 4
          %s480 = int_to_ptr.hbm [resolvable:$true] %s479
          %482 = dma.vmem_to_hbm [thread:$0]  %s478, 16, %s480, %s467
        $region52: #{tpu_custom_call.1} parent=27 // pred_fallthru
          _
      $region28: #{tpu_custom_call.1} parent=5 // pred_fallthru
        _
      %p483 = scmp.le.s32.totalorder 2, %s17
      // Predicated region
      $region53: #{tpu_custom_call.1} parent=5 // pred_check
        %p484 = pneg %p483
      $region54: #{tpu_custom_call.1} parent=5 // pred_check_branch
        %486 = sbr.rel (%p484) target = $region56
      $region55: #{tpu_custom_call.1} parent=5 // pred_region
        %s487 = ssub.s32 %s17, 2
        // Predicated region
        $region57: #{tpu_custom_call.1} parent=55 // pred_check
          %p488 = pneg %p122
        $region58: #{tpu_custom_call.1} parent=55 // pred_check_branch
          %490 = sbr.rel (%p488) target = $region60
        $region59: #{tpu_custom_call.1} parent=55 // pred_region
          %s491 = sand.u32 %s107, 1
          %s492 = scalar_lea.sflag [#allocation4], %s491
          %s493 = sand.u32 %s107, 1
          %s494 = scalar_lea.vmem [#allocation7], %s493
          %496 = dma.done %s492, 16
        $region60: #{tpu_custom_call.1} parent=55 // pred_fallthru
          _
      $region56: #{tpu_custom_call.1} parent=5 // pred_fallthru
        _
    $region6: #{tpu_custom_call.1} parent=1 // loop_footer
      %s21 = sadd.s32 1, %s17
    $region7: #{tpu_custom_call.1} parent=1 // loop_footer_branch
      %16 = sbr.rel target = $region3
    $region8: #{tpu_custom_call.1} parent=1 // loop_exit
      _
    %497 = vsyncpa [#allocation3], 1
    %s498 = scalar_lea.sflag [#allocation3], 1
    %499 = vsyncpa %s498, 1
    %500 = vsyncpa [#allocation6], 1
    %s501 = scalar_lea.sflag [#allocation6], 1
    %502 = vsyncpa %s501, 1
    %503 = vsyncpa [#allocation4], 1
    %s504 = scalar_lea.sflag [#allocation4], 1
    %505 = vsyncpa %s504, 1

</llo_original>
